<compile_context>
chip_gen: v7x
topology: tpu7x:2x2x1
jax: 0.10.0
libtpu: 0.0.40
codegen_flags: <defaults>
</compile_context>

<pallas_src>
import functools

import jax
import jax.numpy as jnp
from jax.experimental import pallas as pl
from jax.experimental.pallas import tpu as pltpu


def _cdiv(a, b):
    return (a + b - 1) // b


def _round_up(x, m):
    return ((x + m - 1) // m) * m


def _rmsnorm_kernel(x_ref, scale_ref, o_ref, *, eps, inv_hidden):
    # x_ref:     (row_tile, hidden)   activation tile
    # scale_ref: (1, hidden)          f32, resident across all grid steps
    # o_ref:     (row_tile, hidden)
    x = x_ref[...].astype(jnp.float32)
    # Block last dim == full hidden extent, so the sum is exact (no padding).
    ms = jnp.sum(x * x, axis=-1, keepdims=True) * inv_hidden        # (row_tile, 1)
    x_normed = x * jax.lax.rsqrt(ms + eps)                          # rsqrt -> EUP slot
    o_ref[...] = (scale_ref[...] * x_normed).astype(o_ref.dtype)


@functools.lru_cache(maxsize=1)
def _vmem_capacity_bytes():
    try:
        info = pltpu.get_tpu_info()
        cap = getattr(info, "vmem_capacity_bytes", None)
        if cap:
            return int(cap)
    except Exception:
        pass
    return 64 << 20  # conservative fallback: assume a v7x-sized (64 MiB) VMEM


def _pick_row_tile(rows, hidden, itemsize):
    """Choose the per-step row tile for a (rows, hidden) RMSNorm.

    - aligned to the packed sublane tiling of the dtype (8 f32 / 16 bf16 / 32 i8)
    - per-step VMEM accounting covers the 2x double-buffered input + output
      tiles (narrow dtype) AND ~2 whole-tile f32 intermediates inside the kernel
    - budget branches on chip VMEM: 64 MiB parts (v7x) get a tighter budget,
      128 MiB parts (v5e/v6e) get bigger tiles (lower per-step overhead)
    - tiny tensors: one grid step (overhead-bound fast path)
    - otherwise an even number (>= 2) of roughly balanced steps so the
      'parallel' row axis splits evenly across v7x's two TensorCores.
    """
    sublane = max(8, 32 // itemsize)
    rows_aligned = _round_up(rows, sublane)
    total_bytes = rows_aligned * hidden * itemsize

    if total_bytes <= (2 << 20):          # small-tensor fast path: one grid step
        return rows_aligned

    data_budget = (80 << 20) if _vmem_capacity_bytes() >= (96 << 20) else (28 << 20)

    # Bytes per tile row: double-buffered input + double-buffered output
    # (narrow dtype) + ~2 f32 whole-row intermediates in the kernel body.
    per_row = 4 * hidden * itemsize + 2 * hidden * 4
    max_tile = max(sublane, data_budget // per_row)
    max_tile = max(sublane, min(1024, (max_tile // sublane) * sublane))

    # Even, balanced step count (v7x megacore); ragged last block stays small.
    steps = max(2, _cdiv(rows, max_tile))
    if steps % 2:
        steps += 1
    row_tile = _round_up(_cdiv(rows, steps), sublane)
    for _ in range(3):                     # fix-up if sublane rounding made it odd
        actual = _cdiv(rows, row_tile)
        if actual <= 1 or actual % 2 == 0:
            break
        row_tile = _round_up(_cdiv(rows, actual + 1), sublane)
    return row_tile


def rmsnorm(x, scale, eps=1e-5):
    """RMSNorm over the last axis of x. scale has shape (x.shape[-1],)."""
    orig_shape = x.shape
    hidden = orig_shape[-1]
    x2d = x.reshape(-1, hidden)
    rows = x2d.shape[0]
    itemsize = jnp.dtype(x.dtype).itemsize

    row_tile = _pick_row_tile(rows, hidden, itemsize)
    grid_rows = _cdiv(rows, row_tile)      # ragged last block handled by Pallas

    scale_f32 = scale.astype(jnp.float32).reshape(1, hidden)

    # Explicit VMEM budget: 2x double-buffered input + output tiles, f32
    # in-kernel intermediates, resident scale row, headroom.  Capped per chip
    # generation (v7x has 64 MiB per TC; v5e/v6e have 128 MiB).
    tile_bytes = row_tile * hidden * itemsize
    f32_scratch = 2 * row_tile * hidden * 4
    vmem_limit = 4 * tile_bytes + f32_scratch + hidden * 4 + (2 << 20)
    cap = (100 << 20) if _vmem_capacity_bytes() >= (96 << 20) else (40 << 20)
    vmem_limit = int(min(cap, max(16 << 20, vmem_limit)))

    kernel = functools.partial(
        _rmsnorm_kernel, eps=float(eps), inv_hidden=1.0 / float(hidden)
    )

    cost = pl.CostEstimate(
        flops=3 * rows * hidden,
        transcendentals=rows,
        bytes_accessed=2 * rows * hidden * itemsize + hidden * 4,
    )

    out = pl.pallas_call(
        kernel,
        out_shape=jax.ShapeDtypeStruct((rows, hidden), x.dtype),
        grid_spec=pltpu.PrefetchScalarGridSpec(
            num_scalar_prefetch=0,
            grid=(grid_rows,),
            in_specs=[
                pl.BlockSpec((row_tile, hidden), lambda i: (i, 0)),
                pl.BlockSpec((1, hidden), lambda i: (0, 0)),   # scale stays resident
            ],
            out_specs=pl.BlockSpec((row_tile, hidden), lambda i: (i, 0)),
        ),
        compiler_params=pltpu.CompilerParams(
            dimension_semantics=("parallel",),
            vmem_limit_bytes=vmem_limit,
        ),
        cost_estimate=cost,
    )(x2d, scale_f32)

    return out.reshape(orig_shape)


def rmsnorm_ref(x, scale, eps=1e-5):
    xf = x.astype(jnp.float32)
    norm_x = jnp.mean(xf * xf, axis=-1, keepdims=True)
    x_normed = xf * jax.lax.rsqrt(norm_x + eps)
    return (scale.astype(jnp.float32) * x_normed).astype(x.dtype)


if __name__ == "__main__":
    key = jax.random.PRNGKey(0)

    # Primary small test, matching the module usage: (batch, seq, hidden).
    batch, seq, hidden = 2, 8, 32
    x = jax.random.normal(key, (batch, seq, hidden), dtype=jnp.float32)
    scale = jnp.ones((hidden,), dtype=jnp.float32)   # nn.Parameter(torch.ones(size))

    out = jax.block_until_ready(rmsnorm(x, scale))
    ref = rmsnorm_ref(x, scale)
    assert out.shape == x.shape
    assert jnp.allclose(out, ref, atol=1e-5, rtol=1e-5), "mismatch vs reference"

    # Ragged path: rows (3*5=15) not a multiple of 8, hidden (96) not a
    # multiple of 128 -> exercises the un-padded ragged block handling.
    x2 = jax.random.normal(jax.random.PRNGKey(1), (3, 5, 96), dtype=jnp.float32)
    s2 = jax.random.normal(jax.random.PRNGKey(2), (96,), dtype=jnp.float32)
    out2 = jax.block_until_ready(rmsnorm(x2, s2))
    ref2 = rmsnorm_ref(x2, s2)
    assert out2.shape == x2.shape
    assert jnp.allclose(out2, ref2, atol=1e-5, rtol=1e-5), "mismatch (ragged path)"

    # bf16 path: different sublane packing + f32 compute inside the kernel.
    x3 = jax.random.normal(jax.random.PRNGKey(3), (4, 7, 128), dtype=jnp.bfloat16)
    s3 = jnp.ones((128,), dtype=jnp.bfloat16)
    out3 = jax.block_until_ready(rmsnorm(x3, s3))
    ref3 = rmsnorm_ref(x3, s3)
    assert out3.shape == x3.shape
    assert jnp.allclose(out3.astype(jnp.float32), ref3.astype(jnp.float32),
                        atol=2e-2, rtol=2e-2), "mismatch (bf16 path)"

    print("KERNEL_OK")
</pallas_src>

<mosaic_0001>
module attributes {stable_mosaic.version = 11 : i64} {
  func.func @_rmsnorm_kernel(%arg0: i32, %arg1: memref<16x32xf32, #tpu.memory_space<vmem>>, %arg2: memref<1x32xf32, #tpu.memory_space<vmem>>, %arg3: memref<16x32xf32, #tpu.memory_space<vmem>>) attributes {dimension_semantics = [#tpu.dimension_semantics<parallel>], iteration_bounds = array<i64: 1>, scalar_prefetch = 0 : i64, scratch_operands = 0 : i64, tpu.core_type = #tpu.core_type<tc>, window_params = [{transform_indices = @transform_0, window_bounds = array<i64: 16, 32>}, {pipeline_mode = #tpu.pipeline_mode<synchronous>, transform_indices = @transform_1, window_bounds = array<i64: 1, 32>}, {transform_indices = @transform_2, window_bounds = array<i64: 16, 32>}]} {
    %c0 = arith.constant 0 : index
    %c0_0 = arith.constant 0 : index
    %0 = vector.load %arg1[%c0, %c0_0] : memref<16x32xf32, #tpu.memory_space<vmem>>, vector<16x32xf32>
    %1 = arith.mulf %0, %0 : vector<16x32xf32>
    %cst = arith.constant dense<0.000000e+00> : vector<16xf32>
    %2 = vector.multi_reduction <add>, %1, %cst [1] : vector<16x32xf32> to vector<16xf32>
    %3 = vector.shape_cast %2 : vector<16xf32> to vector<16x1xf32>
    %cst_1 = arith.constant 3.125000e-02 : f32
    %4 = vector.broadcast %cst_1 : f32 to vector<16x1xf32>
    %5 = arith.mulf %3, %4 : vector<16x1xf32>
    %cst_2 = arith.constant 9.99999974E-6 : f32
    %6 = vector.broadcast %cst_2 : f32 to vector<16x1xf32>
    %7 = arith.addf %5, %6 : vector<16x1xf32>
    %8 = math.rsqrt %7 : vector<16x1xf32>
    %9 = vector.broadcast %8 : vector<16x1xf32> to vector<16x32xf32>
    %10 = arith.mulf %0, %9 : vector<16x32xf32>
    %c0_3 = arith.constant 0 : index
    %c0_4 = arith.constant 0 : index
    %11 = vector.load %arg2[%c0_3, %c0_4] : memref<1x32xf32, #tpu.memory_space<vmem>>, vector<1x32xf32>
    %12 = vector.broadcast %11 : vector<1x32xf32> to vector<16x32xf32>
    %13 = arith.mulf %12, %10 : vector<16x32xf32>
    %c0_5 = arith.constant 0 : index
    %c0_6 = arith.constant 0 : index
    %14 = vector.load %arg3[%c0_5, %c0_6] : memref<16x32xf32, #tpu.memory_space<vmem>>, vector<16x32xf32>
    tpu.vector_store %arg3[%c0_5, %c0_6], %13 {strides = array<i32>} : memref<16x32xf32, #tpu.memory_space<vmem>>, vector<16x32xf32>,
    return
  }
  func.func @transform_0(%arg0: i32) -> (i32, i32) {
    %c0_i32 = arith.constant 0 : i32
    %c0_i32_0 = arith.constant 0 : i32
    return %arg0, %c0_i32 : i32, i32
  }
  func.func @transform_1(%arg0: i32) -> (i32, i32) {
    %c0_i32 = arith.constant 0 : i32
    %c0_i32_0 = arith.constant 0 : i32
    %c0_i32_1 = arith.constant 0 : i32
    return %c0_i32, %c0_i32_0 : i32, i32
  }
  func.func @transform_2(%arg0: i32) -> (i32, i32) {
    %c0_i32 = arith.constant 0 : i32
    %c0_i32_0 = arith.constant 0 : i32
    return %arg0, %c0_i32 : i32, i32
  }
}

</mosaic_0001>

<llo_original>
// kernel: tpu_custom_call.1
$region0: #{tpu_custom_call.1}
  #allocation0 [shape = 'u32[]', space=smem, size = 0x4, offset = 0x4, fixed_abs, tag = 'smem constant byte address 0x4 - core index']
  #allocation1 [shape = 'u32[144,128]{1,0:T(1,128)}', space=vmem, size = 0x12000, scoped, tag = 'internal scratch']
  %s0 = inlined_call_operand.hbm [shape: f32[16,32], index: 0, kind: input, shape index: {}]
  %s1 = inlined_call_operand.vmem [shape: f32[1,32], index: 1, kind: input, shape index: {}]
  %s2 = inlined_call_operand.hbm [shape: f32[16,32], index: 2, kind: output, shape index: {}]
  %s3 = sld [smem:[#allocation0]]
  $region22: #{tpu_custom_call.1} parent=0
    _
  %s5 = ssub.s32 1, %s3
  %s6 = scalar_select 0, %s5, %s3
  $region1: #{tpu_custom_call.1} parent=0
    #allocation2 [shape = 'u8[8192]{0}', space=vmem, size = 0x2000, scoped, tag = 'input window, operand 0, single buffered']
    #allocation3 [shape = 's32[1]{0}', space=sflag, size = 0x4, scoped, tag = 'scoped memory for tpu_custom_call.1']
    #allocation4 [shape = 's32[1]{0}', space=sflag, size = 0x4, scoped, tag = 'scoped memory for tpu_custom_call.1']
    #allocation5 [shape = 'u8[8192]{0}', space=vmem, size = 0x2000, scoped, tag = 'output window, operand 0, single buffered']
    %7 = vsyncpa [#allocation3], 0
    %8 = vsyncpa [#allocation4], 0
    // Predicated region
    $region2: #{tpu_custom_call.1} parent=1 // pred_check
      _
    $region3: #{tpu_custom_call.1} parent=1 // pred_check_branch
      %10 = sbr.rel (0) target = $region5
    $region4: #{tpu_custom_call.1} parent=1 // pred_region
      %s12 = ssub.s32 256, 256
      %13 = vsyncadd [#allocation3], %s12
      %s14 = sshll.u32 [#allocation2], 4
      %s15 = int_to_ptr.vmem [resolvable:$true] %s14
      %20 = dma.hbm_to_vmem [thread:$0]  %s0, 256, %s15, [#allocation3], 128, 128, 8
    $region5: #{tpu_custom_call.1} parent=1 // pred_fallthru
      _
    // Predicated region
    $region6: #{tpu_custom_call.1} parent=1 // pred_check
      _
    $region7: #{tpu_custom_call.1} parent=1 // pred_check_branch
      %22 = sbr.rel (0) target = $region9
    $region8: #{tpu_custom_call.1} parent=1 // pred_region
      _
    $region9: #{tpu_custom_call.1} parent=1 // pred_fallthru
      _
    // Predicated region
    $region10: #{tpu_custom_call.1} parent=1 // pred_check
      _
    $region11: #{tpu_custom_call.1} parent=1 // pred_check_branch
      %24 = sbr.rel (0) target = $region13
    $region12: #{tpu_custom_call.1} parent=1 // pred_region
      %25 = dma.done [#allocation3], 256
    $region13: #{tpu_custom_call.1} parent=1 // pred_fallthru
      _
    %v26 = vld [vmem:[#allocation2] sm:$0xff]
    %v27 = vld [vmem:[#allocation2 + $0x8] sm:$0xff]
    %v28 = vmul.f32 %v26, %v26
    %v29 = vmul.f32 %v27, %v27
    %vm30 = vcmask 261120
    %v31 = vsel %vm30, %v28, 0.0
    %32 = vadd.xlane.f32.xlu0 %v31
    %v33 = vpop.xlane.xlu0 %32
    %v34 = vsel %vm30, %v29, 0.0
    %35 = vadd.xlane.f32.xlu0 %v34
    %v36 = vpop.xlane.xlu0 %35
    %v37 = vmul.f32 %v33, 0.03125
    %v38 = vmul.f32 %v36, 0.03125
    %v39 = vadd.f32 %v37, 1e-05
    %v40 = vadd.f32 %v38, 1e-05
    %v41 = vrsqrt.pop %v39
    %v42 = vrsqrt.pop %v40
    %v43 = vmul.f32 %v26, %v41
    %v44 = vmul.f32 %v27, %v42
    %v45 = vld [vmem:[%s1] sm:$0x1]
    %v47 = vlaneseq
    %v48 = vshrl.u32 %v47, 7
    %v49 = vsub.s32 0, %v48
    %v50 = vrot.slane %v45, %v49
    %v52 = vmul.f32 %v50, %v43
    %v53 = vmul.f32 %v50, %v44
    %54 = vst.msk [vmem:[#allocation5] sm:$0xff] %vm30, %v52
    %55 = vst.msk [vmem:[#allocation5 + $0x8] sm:$0xff] %vm30, %v53
    // Predicated region
    $region14: #{tpu_custom_call.1} parent=1 // pred_check
      _
    $region15: #{tpu_custom_call.1} parent=1 // pred_check_branch
      %57 = sbr.rel (0) target = $region17
    $region16: #{tpu_custom_call.1} parent=1 // pred_region
      %s59 = ssub.s32 256, 256
      %60 = vsyncadd [#allocation4], %s59
      %s61 = sshll.u32 [#allocation5], 4
      %s62 = int_to_ptr.vmem [resolvable:$true] %s61
      %67 = dma.vmem_to_hbm [thread:$0]  %s62, 256, %s2, [#allocation4], 128, 128, 8
    $region17: #{tpu_custom_call.1} parent=1 // pred_fallthru
      _
    // Predicated region
    $region18: #{tpu_custom_call.1} parent=1 // pred_check
      _
    $region19: #{tpu_custom_call.1} parent=1 // pred_check_branch
      %69 = sbr.rel (0) target = $region21
    $region20: #{tpu_custom_call.1} parent=1 // pred_region
      %70 = dma.done [#allocation4], 256
    $region21: #{tpu_custom_call.1} parent=1 // pred_fallthru
      _
    %71 = vsyncpa [#allocation3], 1
    %72 = vsyncpa [#allocation4], 1

</llo_original>
